<compile_context>
chip_gen: v6e
topology: v6e:2x2x1
jax: 0.10.0
libtpu: 0.0.40
codegen_flags: <defaults>
</compile_context>

<pallas_src>
import numpy as np
import jax
import jax.numpy as jnp
from jax.experimental import pallas as pl
from jax.experimental.pallas import tpu as pltpu


def _round_up(a: int, b: int) -> int:
    return (a + b - 1) // b * b


def _choose_tile(dim: int, target: int, align: int):
    """Pick (tile, padded_dim) with tile a multiple of `align` and <= target.

    Prefers a tile that exactly divides the align-rounded dim (no extra padding
    and no post-kernel slice); falls back to padding the dim up to the target
    tile only when the best exact divisor would be tiny relative to the target.
    """
    padded = _round_up(dim, align)
    cap = min(target, padded)
    cap = max(align, cap - cap % align)
    best = align
    t = align
    while t <= cap:
        if padded % t == 0:
            best = t
        t += align
    if padded > cap and best * 4 < cap:
        # No decent exact divisor: pad the dim to a multiple of the target tile.
        return cap, _round_up(dim, cap)
    return best, padded


def _proj_kernel_accout(x_ref, w_ref, b_ref, o_ref):
    # f32 output: accumulate directly into the (VMEM-resident across K) output
    # block.  Bias is folded into the k == 0 step.
    k = pl.program_id(2)
    partial = jnp.dot(x_ref[...], w_ref[...], preferred_element_type=jnp.float32)

    @pl.when(k == 0)
    def _():
        o_ref[...] = partial + b_ref[...]

    @pl.when(k > 0)
    def _():
        o_ref[...] += partial


def _proj_kernel_scratch(x_ref, w_ref, b_ref, o_ref, acc_ref):
    # Non-f32 output: f32 scratch accumulator, cast once at the last K step.
    k = pl.program_id(2)
    partial = jnp.dot(x_ref[...], w_ref[...], preferred_element_type=jnp.float32)

    @pl.when(k == 0)
    def _():
        acc_ref[...] = partial + b_ref[...]

    @pl.when(k > 0)
    def _():
        acc_ref[...] += partial

    @pl.when(k == pl.num_programs(2) - 1)
    def _():
        o_ref[...] = acc_ref[...].astype(o_ref.dtype)


def prepare_projection_weights(weight, bias, *, compute_dtype=jnp.bfloat16):
    """One-time (init) prep of PyTorch-Linear params for the kernel.

    weight: (vocab, d_m) as in nn.Linear; bias: (vocab,).
    Returns (weight_t, bias_f32) = ((d_m, vocab) in compute_dtype, f32 bias).
    Doing the transpose/cast here keeps GiB-scale weight copies out of the
    per-call hot path.
    """
    weight_t = jnp.asarray(weight).T.astype(compute_dtype)
    bias_f32 = jnp.asarray(bias).astype(jnp.float32)
    return weight_t, bias_f32


def projection_layer(
    x,
    weight_t,
    bias,
    *,
    tm: int = 1024,
    tn: int = 2048,
    tk: int = 512,
    compute_dtype=jnp.bfloat16,
    out_dtype=None,
):
    """x: (batch, seq, d_m); weight_t: (d_m, vocab); bias: (vocab,) -> (batch, seq, vocab)."""
    B, S, K = x.shape
    Kw, N = weight_t.shape
    assert K == Kw, "d_m mismatch between x and weight"
    M = B * S

    out_dtype = np.dtype(out_dtype) if out_dtype is not None else np.dtype(x.dtype)
    cdt = np.dtype(compute_dtype) if compute_dtype is not None else np.dtype(x.dtype)
    in_item = cdt.itemsize
    out_item = out_dtype.itemsize
    sublane = 32 // in_item  # 8 for f32, 16 for bf16

    # Tile choice: prefer exact divisors of the (8/128-aligned) dims so no
    # output padding / slice copy is needed for typical LM-head shapes.
    tm, Mp = _choose_tile(M, tm, sublane)
    tn, Np = _choose_tile(N, tn, 128)
    tk, Kp = _choose_tile(K, tk, 128)

    # v7x megacore: if the whole problem is a single (i, j) tile, split the
    # vocab axis so both TensorCores get a parallel tile.
    if Mp // tm == 1 and Np // tn == 1 and tn >= 256 and (tn // 2) % 128 == 0:
        tn //= 2

    # Cast / pad only when actually required (pre-prepared weights are no-ops).
    x2d = x.reshape(M, K)
    if x2d.dtype != cdt:
        x2d = x2d.astype(cdt)
    w2d = weight_t if weight_t.dtype == cdt else weight_t.astype(cdt)
    b2d = bias.reshape(1, N)
    if b2d.dtype != jnp.float32:
        b2d = b2d.astype(jnp.float32)

    if (Mp, Kp) != (M, K):
        x2d = jnp.pad(x2d, ((0, Mp - M), (0, Kp - K)))
    if (Kp, Np) != (K, N):
        w2d = jnp.pad(w2d, ((0, Kp - K), (0, Np - N)))
    if Np != N:
        b2d = jnp.pad(b2d, ((0, 0), (0, Np - N)))

    grid = (Mp // tm, Np // tn, Kp // tk)

    use_scratch = out_dtype != np.dtype(np.float32)
    kernel = _proj_kernel_scratch if use_scratch else _proj_kernel_accout
    scratch_shapes = [pltpu.VMEM((tm, tn), jnp.float32)] if use_scratch else []

    # VMEM budget: double-buffered x / w (compute dtype), bias (f32), output
    # (output dtype), plus the f32 accumulator only when used.
    vmem_need = (
        2 * (tm * tk + tk * tn) * in_item
        + 2 * tn * 4
        + 2 * tm * tn * out_item
        + (tm * tn * 4 if use_scratch else 0)
    )
    try:
        vmem_cap = int(pltpu.get_tpu_info().vmem_capacity_bytes)
    except Exception:
        vmem_cap = 64 << 20  # conservative (v7x) fallback
    vmem_limit = max(min(vmem_need + (8 << 20), vmem_cap - (4 << 20)), 16 << 20)

    cost = pl.CostEstimate(
        flops=2 * M * K * N,
        transcendentals=0,
        bytes_accessed=(M * K + K * N) * in_item + N * 4 + M * N * out_item,
    )

    out2d = pl.pallas_call(
        kernel,
        out_shape=jax.ShapeDtypeStruct((Mp, Np), out_dtype),
        grid_spec=pltpu.PrefetchScalarGridSpec(
            num_scalar_prefetch=0,
            grid=grid,
            in_specs=[
                pl.BlockSpec((tm, tk), lambda i, j, k: (i, k)),  # activations
                pl.BlockSpec((tk, tn), lambda i, j, k: (k, j)),  # weights
                pl.BlockSpec((1, tn), lambda i, j, k: (0, j)),   # bias (f32)
            ],
            out_specs=pl.BlockSpec((tm, tn), lambda i, j, k: (i, j)),
            scratch_shapes=scratch_shapes,
        ),
        compiler_params=pltpu.CompilerParams(
            dimension_semantics=("parallel", "parallel", "arbitrary"),
            vmem_limit_bytes=vmem_limit,
        ),
        cost_estimate=cost,
    )(x2d, w2d, b2d)

    if Mp != M or Np != N:
        out2d = out2d[:M, :N]
    return out2d.reshape(B, S, N)


if __name__ == "__main__":
    # Small shapes consistent with the module's forward: (batch, seq, d_m) -> (batch, seq, vocab)
    batch, seq, d_m, vocab_size = 2, 8, 32, 256

    key = jax.random.PRNGKey(0)
    kx, kw, kb = jax.random.split(key, 3)

    x = jax.random.normal(kx, (batch, seq, d_m), dtype=jnp.float32)
    # PyTorch Linear weight is (vocab, d_m); bias (vocab,).
    bound = 1.0 / (d_m ** 0.5)
    weight = jax.random.uniform(
        kw, (vocab_size, d_m), dtype=jnp.float32, minval=-bound, maxval=bound
    )
    bias = jax.random.uniform(
        kb, (vocab_size,), dtype=jnp.float32, minval=-bound, maxval=bound
    )

    ref = x @ weight.T + bias

    # Exact f32 path: tight tolerance.
    w_t_f32, b_f32 = prepare_projection_weights(weight, bias, compute_dtype=jnp.float32)
    out_f32 = projection_layer(x, w_t_f32, b_f32, compute_dtype=jnp.float32)
    jax.block_until_ready(out_f32)
    assert out_f32.shape == (batch, seq, vocab_size)
    assert jnp.allclose(out_f32, ref, atol=1e-5, rtol=1e-5), "f32 mismatch vs reference"

    # Default path: bf16 operand streaming (f32 accumulate + f32 bias): loose tolerance.
    w_t_bf16, b_f32 = prepare_projection_weights(weight, bias)  # bf16 weights, f32 bias
    out_bf16 = projection_layer(x, w_t_bf16, b_f32)
    jax.block_until_ready(out_bf16)
    assert out_bf16.shape == (batch, seq, vocab_size)
    assert jnp.allclose(out_bf16, ref, atol=1e-1, rtol=5e-2), "bf16 mismatch vs reference"

    print("KERNEL_OK")
</pallas_src>

<mosaic_0001>
module attributes {stable_mosaic.version = 11 : i64} {
  func.func @_proj_kernel_accout(%arg0: i32, %arg1: i32, %arg2: i32, %arg3: memref<16x128xf32, #tpu.memory_space<vmem>>, %arg4: memref<128x128xf32, #tpu.memory_space<vmem>>, %arg5: memref<1x128xf32, #tpu.memory_space<vmem>>, %arg6: memref<16x128xf32, #tpu.memory_space<vmem>>) attributes {dimension_semantics = [#tpu.dimension_semantics<parallel>, #tpu.dimension_semantics<parallel>, #tpu.dimension_semantics<arbitrary>], iteration_bounds = array<i64: 1, 2, 1>, scalar_prefetch = 0 : i64, scratch_operands = 0 : i64, tpu.core_type = #tpu.core_type<tc>, window_params = [{transform_indices = @transform_0, window_bounds = array<i64: 16, 128>}, {transform_indices = @transform_1, window_bounds = array<i64: 128, 128>}, {transform_indices = @transform_2, window_bounds = array<i64: 1, 128>}, {transform_indices = @transform_3, window_bounds = array<i64: 16, 128>}]} {
    %c0 = arith.constant 0 : index
    %c0_0 = arith.constant 0 : index
    %0 = vector.load %arg3[%c0, %c0_0] : memref<16x128xf32, #tpu.memory_space<vmem>>, vector<16x128xf32>
    %c0_1 = arith.constant 0 : index
    %c0_2 = arith.constant 0 : index
    %1 = vector.load %arg4[%c0_1, %c0_2] : memref<128x128xf32, #tpu.memory_space<vmem>>, vector<128x128xf32>
    %cst = arith.constant dense<0.000000e+00> : vector<16x128xf32>
    %2 = tpu.matmul %0, %1, %cst {dimension_numbers = #tpu.dot_dimension_numbers<[1], [0], [0], [1], [0, 0, 1, 1], [], []>} : vector<16x128xf32>, vector<128x128xf32>, vector<16x128xf32> -> vector<16x128xf32>
    %c0_i32 = arith.constant 0 : i32
    %3 = arith.cmpi eq, %arg2, %c0_i32 : i32
    %4 = arith.extui %3 : i1 to i32
    %c0_i32_3 = arith.constant 0 : i32
    %5 = arith.cmpi ne, %4, %c0_i32_3 : i32
    scf.if %5 {
      %c0_6 = arith.constant 0 : index
      %c0_7 = arith.constant 0 : index
      %9 = vector.load %arg5[%c0_6, %c0_7] : memref<1x128xf32, #tpu.memory_space<vmem>>, vector<1x128xf32>
      %10 = vector.broadcast %9 : vector<1x128xf32> to vector<16x128xf32>
      %11 = arith.addf %2, %10 : vector<16x128xf32>
      %c0_8 = arith.constant 0 : index
      %c0_9 = arith.constant 0 : index
      %12 = vector.load %arg6[%c0_8, %c0_9] : memref<16x128xf32, #tpu.memory_space<vmem>>, vector<16x128xf32>
      tpu.vector_store %arg6[%c0_8, %c0_9], %11 {strides = array<i32>} : memref<16x128xf32, #tpu.memory_space<vmem>>, vector<16x128xf32>,
    } else {
    }
    %c0_i32_4 = arith.constant 0 : i32
    %6 = arith.cmpi sgt, %arg2, %c0_i32_4 : i32
    %7 = arith.extui %6 : i1 to i32
    %c0_i32_5 = arith.constant 0 : i32
    %8 = arith.cmpi ne, %7, %c0_i32_5 : i32
    scf.if %8 {
      %c0_6 = arith.constant 0 : index
      %c0_7 = arith.constant 0 : index
      %9 = vector.load %arg6[%c0_6, %c0_7] : memref<16x128xf32, #tpu.memory_space<vmem>>, vector<16x128xf32>
      %10 = arith.addf %9, %2 : vector<16x128xf32>
      %c0_8 = arith.constant 0 : index
      %c0_9 = arith.constant 0 : index
      %11 = vector.load %arg6[%c0_8, %c0_9] : memref<16x128xf32, #tpu.memory_space<vmem>>, vector<16x128xf32>
      tpu.vector_store %arg6[%c0_8, %c0_9], %10 {strides = array<i32>} : memref<16x128xf32, #tpu.memory_space<vmem>>, vector<16x128xf32>,
    } else {
    }
    return
  }
  func.func @transform_0(%arg0: i32, %arg1: i32, %arg2: i32) -> (i32, i32) {
    %c0_i32 = arith.constant 0 : i32
    return %arg0, %arg2 : i32, i32
  }
  func.func @transform_1(%arg0: i32, %arg1: i32, %arg2: i32) -> (i32, i32) {
    %c0_i32 = arith.constant 0 : i32
    return %arg2, %arg1 : i32, i32
  }
  func.func @transform_2(%arg0: i32, %arg1: i32, %arg2: i32) -> (i32, i32) {
    %c0_i32 = arith.constant 0 : i32
    %c0_i32_0 = arith.constant 0 : i32
    return %c0_i32, %arg1 : i32, i32
  }
  func.func @transform_3(%arg0: i32, %arg1: i32, %arg2: i32) -> (i32, i32) {
    %c0_i32 = arith.constant 0 : i32
    return %arg0, %arg1 : i32, i32
  }
}

</mosaic_0001>

<llo_original>
// kernel: tpu_custom_call.1
$region0: #{tpu_custom_call.1}
  #allocation0 [shape = 'u32[]', space=smem, size = 0x4, offset = 0x4, fixed_abs, tag = 'smem constant byte address 0x4 - core index']
  #allocation1 [shape = 'u32[144,128]{1,0:T(1,128)}', space=vmem, size = 0x12000, scoped, tag = 'internal scratch']
  %s0 = inlined_call_operand.hbm [shape: f32[16,128], index: 0, kind: input, shape index: {}]
  %s1 = inlined_call_operand.hbm [shape: f32[128,256], index: 1, kind: input, shape index: {}]
  %s2 = inlined_call_operand.vmem [shape: f32[1,256], index: 2, kind: input, shape index: {}]
  %s3 = inlined_call_operand.hbm [shape: f32[16,256], index: 3, kind: output, shape index: {}]
  %s4 = sld [smem:[#allocation0]]
  $region61: #{tpu_custom_call.1} parent=0
    _
  %s6 = ssub.s32 1, %s4
  %s7 = scalar_select 0, %s6, %s4
  $region1: #{tpu_custom_call.1} parent=0
    #allocation2 [shape = 'u8[8192]{0}', space=vmem, size = 0x2000, scoped, tag = 'input window, operand 0, single buffered']
    #allocation3 [shape = 's32[2]{0}', space=sflag, size = 0x8, scoped, tag = 'scoped memory for tpu_custom_call.1']
    #allocation4 [shape = 's32[2]{0}', space=sflag, size = 0x8, scoped, tag = 'scoped memory for tpu_custom_call.1']
    #allocation5 [shape = 'u8[131072]{0}', space=vmem, size = 0x20000, scoped, tag = 'input window, operand 1']
    #allocation6 [shape = 's32[2]{0}', space=sflag, size = 0x8, scoped, tag = 'scoped memory for tpu_custom_call.1']
    #allocation7 [shape = 'u8[16384]{0}', space=vmem, size = 0x4000, scoped, tag = 'output window, operand 0']
    %8 = vsyncpa [#allocation3], 0
    %9 = vsyncpa [#allocation6], 0
    %s10 = scalar_lea.sflag [#allocation6], 1
    %11 = vsyncpa %s10, 0
    %12 = vsyncpa [#allocation4], 0
    %s13 = scalar_lea.sflag [#allocation4], 1
    %14 = vsyncpa %s13, 0
    loop: start=0, step=1, limit=4
    $region2: #{tpu_custom_call.1} parent=1 // loop_pre_header
      _
    $region3: #{tpu_custom_call.1} parent=1 // loop_header
      %s16 = sphi 0, %s20
      %p17 = scmp.ge.s32.totalorder %s16, 4
      %s23 = sphi 0, %s42
      %s24 = sphi 0, %s38
      %s25 = sphi 0, %s34
      %s26 = sphi 0, %s23
      %s27 = sphi 0, %s24
      %s28 = sphi 0, %s25
      %s29 = sphi 0, %s26
      %s30 = sphi 0, %s27
      %s31 = sphi 0, %s28
      %s47 = sphi 0, %s49
      %s50 = sphi 0, %s47
      %s51 = sphi 0, %s50
      %s67 = sphi 0, %s51
      %s75 = sphi 0, %s77
      %s78 = sphi 0, %s75
      %s79 = sphi 0, %s78
      %s95 = sphi 0, %s79
      %s101 = sphi 0, %s103
      %s104 = sphi 0, %s101
      %s105 = sphi 0, %s104
      %s121 = sphi 0, %s105
      %s129 = sphi 0, %s131
      %s132 = sphi 0, %s129
      %s133 = sphi 0, %s132
      %s149 = sphi 0, %s133
    $region4: #{tpu_custom_call.1} parent=1 // loop_header_branch
      %19 = sbr.rel (%p17) target = $region8
    $region5: #{tpu_custom_call.1} parent=1 // loop_body
      %s21 = ssub.s32 %s16, 1
      %s22 = ssub.s32 %s16, 2
      %s32 = sadd.s32 1, %s25
      %p33 = scmp.ge.s32.totalorder %s32, 1
      %s34 = scalar_select %p33, 0, %s32
      %s35 = sadd.s32 1, %s24
      %s36 = scalar_select %p33, %s35, %s24
      %p37 = scmp.ge.s32.totalorder %s36, 2
      %s38 = scalar_select %p37, 0, %s36
      %s39 = sadd.s32 1, %s23
      %s40 = scalar_select %p37, %s39, %s23
      %p41 = scmp.ge.s32.totalorder %s40, 1
      %s42 = scalar_select %p41, 0, %s40
      %s43 = ssub.s32 %s23, %s42
      %s44 = ssub.s32 %s25, %s34
      %s45 = sor.u32 %s43, %s44
      %p46 = scmp.eq.s32.totalorder %s45, 0
      %s48 = sadd.s32 %s47, 1
      %s49 = scalar_select %p46, %s47, %s48
      %p52 = pneg %p46
      %p53 = scmp.eq.s32.totalorder %s16, 1
      %p54 = por %p52, %p53
      %p55 = scmp.ne.s32.totalorder %s47, %s50
      %p56 = scmp.eq.s32.totalorder %s16, 0
      %p57 = por %p55, %p56
      %p58 = scmp.ne.s32.totalorder %s47, %s50
      %p59 = scmp.eq.s32.totalorder %s21, 1
      %p60 = por %p58, %p59
      %p61 = scmp.ne.s32.totalorder %s50, %s51
      %p62 = scmp.eq.s32.totalorder %s21, 0
      %p63 = por %p61, %p62
      %p64 = scmp.ne.s32.totalorder %s50, %s51
      %p65 = scmp.eq.s32.totalorder %s22, 1
      %p66 = por %p64, %p65
      %p68 = scmp.ne.s32.totalorder %s51, %s67
      %p69 = scmp.eq.s32.totalorder %s22, 0
      %p70 = por %p68, %p69
      %s71 = ssub.s32 %s25, %s34
      %s72 = ssub.s32 %s24, %s38
      %s73 = sor.u32 %s71, %s72
      %p74 = scmp.eq.s32.totalorder %s73, 0
      %s76 = sadd.s32 %s75, 1
      %s77 = scalar_select %p74, %s75, %s76
      %p80 = pneg %p74
      %p81 = scmp.eq.s32.totalorder %s16, 1
      %p82 = por %p80, %p81
      %p83 = scmp.ne.s32.totalorder %s75, %s78
      %p84 = scmp.eq.s32.totalorder %s16, 0
      %p85 = por %p83, %p84
      %p86 = scmp.ne.s32.totalorder %s75, %s78
      %p87 = scmp.eq.s32.totalorder %s21, 1
      %p88 = por %p86, %p87
      %p89 = scmp.ne.s32.totalorder %s78, %s79
      %p90 = scmp.eq.s32.totalorder %s21, 0
      %p91 = por %p89, %p90
      %p92 = scmp.ne.s32.totalorder %s78, %s79
      %p93 = scmp.eq.s32.totalorder %s22, 1
      %p94 = por %p92, %p93
      %p96 = scmp.ne.s32.totalorder %s79, %s95
      %p97 = scmp.eq.s32.totalorder %s22, 0
      %p98 = por %p96, %p97
      %s99 = ssub.s32 %s24, %s38
      %p100 = scmp.eq.s32.totalorder %s99, 0
      %s102 = sadd.s32 %s101, 1
      %s103 = scalar_select %p100, %s101, %s102
      %p106 = pneg %p100
      %p107 = scmp.eq.s32.totalorder %s16, 1
      %p108 = por %p106, %p107
      %p109 = scmp.ne.s32.totalorder %s101, %s104
      %p110 = scmp.eq.s32.totalorder %s16, 0
      %p111 = por %p109, %p110
      %p112 = scmp.ne.s32.totalorder %s101, %s104
      %p113 = scmp.eq.s32.totalorder %s21, 1
      %p114 = por %p112, %p113
      %p115 = scmp.ne.s32.totalorder %s104, %s105
      %p116 = scmp.eq.s32.totalorder %s21, 0
      %p117 = por %p115, %p116
      %p118 = scmp.ne.s32.totalorder %s104, %s105
      %p119 = scmp.eq.s32.totalorder %s22, 1
      %p120 = por %p118, %p119
      %p122 = scmp.ne.s32.totalorder %s105, %s121
      %p123 = scmp.eq.s32.totalorder %s22, 0
      %p124 = por %p122, %p123
      %s125 = ssub.s32 %s23, %s42
      %s126 = ssub.s32 %s24, %s38
      %s127 = sor.u32 %s125, %s126
      %p128 = scmp.eq.s32.totalorder %s127, 0
      %s130 = sadd.s32 %s129, 1
      %s131 = scalar_select %p128, %s129, %s130
      %p134 = pneg %p128
      %p135 = scmp.eq.s32.totalorder %s16, 1
      %p136 = por %p134, %p135
      %p137 = scmp.ne.s32.totalorder %s129, %s132
      %p138 = scmp.eq.s32.totalorder %s16, 0
      %p139 = por %p137, %p138
      %p140 = scmp.ne.s32.totalorder %s129, %s132
      %p141 = scmp.eq.s32.totalorder %s21, 1
      %p142 = por %p140, %p141
      %p143 = scmp.ne.s32.totalorder %s132, %s133
      %p144 = scmp.eq.s32.totalorder %s21, 0
      %p145 = por %p143, %p144
      %p146 = scmp.ne.s32.totalorder %s132, %s133
      %p147 = scmp.eq.s32.totalorder %s22, 1
      %p148 = por %p146, %p147
      %p150 = scmp.ne.s32.totalorder %s133, %s149
      %p151 = scmp.eq.s32.totalorder %s22, 0
      %p152 = por %p150, %p151
      %p153 = scmp.le.s32.totalorder 1, %s16
      %p154 = scmp.lt.s32.totalorder %s16, 3
      %p155 = pnand %p153, %p154
      %p156 = pneg %p155
      // Predicated region
      $region9: #{tpu_custom_call.1} parent=5 // pred_check
        _
      $region10: #{tpu_custom_call.1} parent=5 // pred_check_branch
        %158 = sbr.rel (%p155) target = $region12
      $region11: #{tpu_custom_call.1} parent=5 // pred_region
        %s159 = ssub.s32 %s16, 1
        // Predicated region
        $region13: #{tpu_custom_call.1} parent=11 // pred_check
          %p160 = pneg %p63
        $region14: #{tpu_custom_call.1} parent=11 // pred_check_branch
          %162 = sbr.rel (%p160) target = $region16
        $region15: #{tpu_custom_call.1} parent=11 // pred_region
          %s163 = smul.u32 2, %s26
          %s165 = ssub.s32 256, 256
          %166 = vsyncadd [#allocation3], %s165
          %s167 = sadd.s32 %s28, %s163
          %s168 = smul.addr %s167, 128
          %s169 = scalar_lea.hbm %s0, %s168
          %s170 = sshll.u32 [#allocation2], 4
          %s171 = int_to_ptr.vmem [resolvable:$true] %s170
          %176 = dma.hbm_to_vmem [thread:$0]  %s169, 256, %s171, [#allocation3], 128, 128, 8
        $region16: #{tpu_custom_call.1} parent=11 // pred_fallthru
          _
      $region12: #{tpu_custom_call.1} parent=5 // pred_fallthru
        _
      %p177 = scmp.lt.s32.totalorder %s16, 2
      // Predicated region
      $region17: #{tpu_custom_call.1} parent=5 // pred_check
        %p178 = pneg %p177
      $region18: #{tpu_custom_call.1} parent=5 // pred_check_branch
        %180 = sbr.rel (%p178) target = $region20
      $region19: #{tpu_custom_call.1} parent=5 // pred_region
        // Predicated region
        $region21: #{tpu_custom_call.1} parent=19 // pred_check
          %p181 = pneg %p85
        $region22: #{tpu_custom_call.1} parent=19 // pred_check_branch
          %183 = sbr.rel (%p181) target = $region24
        $region23: #{tpu_custom_call.1} parent=19 // pred_region
          %s184 = sand.u32 %s75, 1
          %s185 = scalar_lea.sflag [#allocation6], %s184
          %s186 = sand.u32 %s75, 1
          %s187 = smul.addr %s186, 128
          %s188 = scalar_lea.vmem [#allocation5], %s187
          %s189 = smul.u32 16, %s25
          %s191 = ssub.s32 2048, 2048
          %192 = vsyncadd %s185, %s191
          %s193 = smul.addr %s189, 2
          %s194 = sadd.s32 %s24, %s193
          %s195 = smul.addr %s194, 128
          %s196 = scalar_lea.hbm %s1, %s195
          %s197 = sshll.u32 %s188, 4
          %s198 = int_to_ptr.vmem [resolvable:$true] %s197
          %203 = dma.hbm_to_vmem [thread:$0]  %s196, 2048, %s198, %s185, 256, 128, 8
        $region24: #{tpu_custom_call.1} parent=19 // pred_fallthru
          _
        // Predicated region
        $region25: #{tpu_custom_call.1} parent=19 // pred_check
          %p204 = pneg %p111
        $region26: #{tpu_custom_call.1} parent=19 // pred_check_branch
          %206 = sbr.rel (%p204) target = $region28
        $region27: #{tpu_custom_call.1} parent=19 // pred_region
          %p207 = scmp.lt.s32.totalorder %s24, 1
          %s208 = scalar_select %p207, %s24, 1
          %s209 = scalar_lea.vmem %s2, %s208
        $region28: #{tpu_custom_call.1} parent=19 // pred_fallthru
          _
      $region20: #{tpu_custom_call.1} parent=5 // pred_fallthru
        _
      %p210 = scmp.le.s32.totalorder 1, %s16
      %p211 = scmp.lt.s32.totalorder %s16, 3
      %p212 = pnand %p210, %p211
      %p213 = pneg %p212
      // Predicated region
      $region29: #{tpu_custom_call.1} parent=5 // pred_check
        _
      $region30: #{tpu_custom_call.1} parent=5 // pred_check_branch
        %215 = sbr.rel (%p212) target = $region32
      $region31: #{tpu_custom_call.1} parent=5 // pred_region
        %s216 = ssub.s32 %s16, 1
        // Predicated region
        $region33: #{tpu_custom_call.1} parent=31 // pred_check
          %p217 = pneg %p63
        $region34: #{tpu_custom_call.1} parent=31 // pred_check_branch
          %219 = sbr.rel (%p217) target = $region36
        $region35: #{tpu_custom_call.1} parent=31 // pred_region
          %220 = dma.done [#allocation3], 256
        $region36: #{tpu_custom_call.1} parent=31 // pred_fallthru
          _
        %s221 = sand.u32 %s78, 1
        %s222 = scalar_lea.sflag [#allocation6], %s221
        %s223 = sand.u32 %s78, 1
        %s224 = smul.addr %s223, 128
        %s225 = scalar_lea.vmem [#allocation5], %s224
        // Predicated region
        $region37: #{tpu_custom_call.1} parent=31 // pred_check
          %p226 = pneg %p91
        $region38: #{tpu_custom_call.1} parent=31 // pred_check_branch
          %228 = sbr.rel (%p226) target = $region40
        $region39: #{tpu_custom_call.1} parent=31 // pred_region
          %229 = dma.done %s222, 2048
        $region40: #{tpu_custom_call.1} parent=31 // pred_fallthru
          _
        %p230 = pneg %p63
        %p231 = pneg %p60
        %s232 = sand.u32 %s78, 1
        %s233 = scalar_lea.sflag [#allocation6], %s232
        %s234 = sand.u32 %s78, 1
        %s235 = smul.addr %s234, 128
        %s236 = scalar_lea.vmem [#allocation5], %s235
        %p237 = pneg %p91
        %p238 = pneg %p88
        %p239 = scmp.lt.s32.totalorder %s27, 1
        %s240 = scalar_select %p239, %s27, 1
        %s241 = scalar_lea.vmem %s2, %s240
        %p242 = pneg %p117
        %p243 = pneg %p114
        %p244 = pneg %p145
        %p245 = pneg %p142
        %s246 = sand.u32 %s132, 1
        %s247 = scalar_lea.sflag [#allocation4], %s246
        %s248 = sand.u32 %s132, 1
        %s249 = smul.addr %s248, 16
        %s250 = scalar_lea.vmem [#allocation7], %s249
        %s251 = smul.u32 2, %s26
        %s252 = smul.u32 16, %s28
        %p253 = scmp.lt.s32.totalorder %s27, 1
        %s254 = scalar_select %p253, %s27, 1
        %s255 = scalar_lea.vmem %s2, %s254
        %s256 = smul.u32 2, %s26
        %v257 = vld [vmem:[#allocation2] sm:$0xff]
        %v258 = vld [vmem:[#allocation2 + $0x8] sm:$0xff]
        %v259 = vld [vmem:[%s225] sm:$0xff]
        %v260 = vld [vmem:[%s225 + $0x8] sm:$0xff]
        %v261 = vld [vmem:[%s225 + $0x10] sm:$0xff]
        %v262 = vld [vmem:[%s225 + $0x18] sm:$0xff]
        %v263 = vld [vmem:[%s225 + $0x20] sm:$0xff]
        %v264 = vld [vmem:[%s225 + $0x28] sm:$0xff]
        %v265 = vld [vmem:[%s225 + $0x30] sm:$0xff]
        %v266 = vld [vmem:[%s225 + $0x38] sm:$0xff]
        %v267 = vld [vmem:[%s225 + $0x40] sm:$0xff]
        %v268 = vld [vmem:[%s225 + $0x48] sm:$0xff]
        %v269 = vld [vmem:[%s225 + $0x50] sm:$0xff]
        %v270 = vld [vmem:[%s225 + $0x58] sm:$0xff]
        %v271 = vld [vmem:[%s225 + $0x60] sm:$0xff]
        %v272 = vld [vmem:[%s225 + $0x68] sm:$0xff]
        %v273 = vld [vmem:[%s225 + $0x70] sm:$0xff]
        %v274 = vld [vmem:[%s225 + $0x78] sm:$0xff]
        %275 = vmatprep.subr.mxu0 0.0
        %276 = vmatpush1.msra.mxu0 %v274
        %277 = vmatprep.subr.mxu0 0.0
        %278 = vmatpush1.msra.mxu0 %v273
        %279 = vmatprep.subr.mxu0 0.0
        %280 = vmatpush1.msra.mxu0 %v272
        %281 = vmatprep.subr.mxu0 0.0
        %282 = vmatpush1.msra.mxu0 %v271
        %283 = vmatprep.subr.mxu0 0.0
        %284 = vmatpush1.msra.mxu0 %v270
        %285 = vmatprep.subr.mxu0 0.0
        %286 = vmatpush1.msra.mxu0 %v269
        %287 = vmatprep.subr.mxu0 0.0
        %288 = vmatpush1.msra.mxu0 %v268
        %289 = vmatprep.subr.mxu0 0.0
        %290 = vmatpush1.msra.mxu0 %v267
        %291 = vmatprep.subr.mxu0 0.0
        %292 = vmatpush1.msra.mxu0 %v266
        %293 = vmatprep.subr.mxu0 0.0
        %294 = vmatpush1.msra.mxu0 %v265
        %295 = vmatprep.subr.mxu0 0.0
        %296 = vmatpush1.msra.mxu0 %v264
        %297 = vmatprep.subr.mxu0 0.0
        %298 = vmatpush1.msra.mxu0 %v263
        %299 = vmatprep.subr.mxu0 0.0
        %300 = vmatpush1.msra.mxu0 %v262
        %301 = vmatprep.subr.mxu0 0.0
        %302 = vmatpush1.msra.mxu0 %v261
        %303 = vmatprep.subr.mxu0 0.0
        %304 = vmatpush1.msra.mxu0 %v260
        %305 = vmatprep.subr.mxu0 0.0
        %306 = vmatpush1.msra.mxu0 %v259
        %307 = vmatprep.subr.mxu0 0.0
        %308 = vmatpush2.msra.mxu0 0.0
        %309 = vmatprep.subr.mxu0 0.0
        %310 = vmatpush2.msra.mxu0 0.0
        %311 = vmatprep.subr.mxu0 0.0
        %312 = vmatpush2.msra.mxu0 0.0
        %313 = vmatprep.subr.mxu0 0.0
        %314 = vmatpush2.msra.mxu0 0.0
        %315 = vmatprep.subr.mxu0 0.0
        %316 = vmatpush2.msra.mxu0 0.0
        %317 = vmatprep.subr.mxu0 0.0
        %318 = vmatpush2.msra.mxu0 0.0
        %319 = vmatprep.subr.mxu0 0.0
        %320 = vmatpush2.msra.mxu0 0.0
        %321 = vmatprep.subr.mxu0 0.0
        %322 = vmatpush2.msra.mxu0 0.0
        %323 = vmatprep.subr.mxu0 0.0
        %324 = vmatpush2.msra.mxu0 0.0
        %325 = vmatprep.subr.mxu0 0.0
        %326 = vmatpush2.msra.mxu0 0.0
        %327 = vmatprep.subr.mxu0 0.0
        %328 = vmatpush2.msra.mxu0 0.0
        %329 = vmatprep.subr.mxu0 0.0
        %330 = vmatpush2.msra.mxu0 0.0
        %331 = vmatprep.subr.mxu0 0.0
        %332 = vmatpush2.msra.mxu0 0.0
        %333 = vmatprep.subr.mxu0 0.0
        %334 = vmatpush2.msra.mxu0 0.0
        %335 = vmatprep.subr.mxu0 0.0
        %336 = vmatpush2.msra.mxu0 0.0
        %337 = vmatprep.subr.mxu0 0.0
        %338 = vmatpush2.msra.mxu0 0.0
        %339 = vmatprep.mubr.f32.mxu0 0.0
        %340 = vmatmul.mubr.f32.gmra.mxu0 %v257
        %v341 = vpop.f32.mrf.mxu0
        %v342 = vadd.f32 0.0, %v341
        %v343 = vpop.f32.mrf.mxu0
        %344 = vmatprep.mubr.f32.mxu0 0.0
        %345 = vmatmul.mubr.f32.gmra.mxu0 %v258
        %v346 = vpop.f32.mrf.mxu0
        %v347 = vadd.f32 0.0, %v346
        %v348 = vpop.f32.mrf.mxu0
        %349 = vdwg.mxu0
        %p350 = scmp.eq.s32.totalorder %s28, 0
        // Predicated region
        $region41: #{tpu_custom_call.1} parent=31 // pred_check
          %p351 = pneg %p350
        $region42: #{tpu_custom_call.1} parent=31 // pred_check_branch
          %353 = sbr.rel (%p351) target = $region44
        $region43: #{tpu_custom_call.1} parent=31 // pred_region
          %v354 = vld [vmem:[%s255] sm:$0x1]
          %v356 = vlaneseq
          %v357 = vshrl.u32 %v356, 7
          %v358 = vsub.s32 0, %v357
          %v359 = vrot.slane %v354, %v358
          %v361 = vadd.f32 %v342, %v359
          %v362 = vadd.f32 %v347, %v359
          %363 = vst [vmem:[%s250] sm:$0xff] %v361
          %364 = vst [vmem:[%s250 + $0x8] sm:$0xff] %v362
        $region44: #{tpu_custom_call.1} parent=31 // pred_fallthru
          _
        %p365 = scmp.gt.s32.totalorder %s28, 0
        // Predicated region
        $region45: #{tpu_custom_call.1} parent=31 // pred_check
          %p366 = pneg %p365
        $region46: #{tpu_custom_call.1} parent=31 // pred_check_branch
          %368 = sbr.rel (%p366) target = $region48
        $region47: #{tpu_custom_call.1} parent=31 // pred_region
          %v369 = vld [vmem:[%s250] sm:$0xff]
          %v370 = vld [vmem:[%s250 + $0x8] sm:$0xff]
          %v371 = vadd.f32 %v369, %v342
          %v372 = vadd.f32 %v370, %v347
          %373 = vst [vmem:[%s250] sm:$0xff] %v371
          %374 = vst [vmem:[%s250 + $0x8] sm:$0xff] %v372
        $region48: #{tpu_custom_call.1} parent=31 // pred_fallthru
          _
        %s375 = sand.u32 %s132, 1
        %s376 = scalar_lea.sflag [#allocation4], %s375
        %s377 = sand.u32 %s132, 1
        %s378 = smul.addr %s377, 16
        %s379 = scalar_lea.vmem [#allocation7], %s378
        // Predicated region
        $region49: #{tpu_custom_call.1} parent=31 // pred_check
          %p380 = pneg %p142
        $region50: #{tpu_custom_call.1} parent=31 // pred_check_branch
          %382 = sbr.rel (%p380) target = $region52
        $region51: #{tpu_custom_call.1} parent=31 // pred_region
          %s383 = smul.u32 2, %s26
          %s385 = ssub.s32 256, 256
          %386 = vsyncadd %s376, %s385
          %s387 = smul.addr %s383, 2
          %s388 = sadd.s32 %s27, %s387
          %s389 = smul.addr %s388, 128
          %s390 = scalar_lea.hbm %s3, %s389
          %s391 = sshll.u32 %s379, 4
          %s392 = int_to_ptr.vmem [resolvable:$true] %s391
          %397 = dma.vmem_to_hbm [thread:$0]  %s392, 256, %s390, %s376, 128, 256, 8
        $region52: #{tpu_custom_call.1} parent=31 // pred_fallthru
          _
      $region32: #{tpu_custom_call.1} parent=5 // pred_fallthru
        _
      %p398 = scmp.le.s32.totalorder 2, %s16
      // Predicated region
      $region53: #{tpu_custom_call.1} parent=5 // pred_check
        %p399 = pneg %p398
      $region54: #{tpu_custom_call.1} parent=5 // pred_check_branch
        %401 = sbr.rel (%p399) target = $region56
      $region55: #{tpu_custom_call.1} parent=5 // pred_region
        %s402 = ssub.s32 %s16, 2
        // Predicated region
        $region57: #{tpu_custom_call.1} parent=55 // pred_check
          %p403 = pneg %p148
        $region58: #{tpu_custom_call.1} parent=55 // pred_check_branch
          %405 = sbr.rel (%p403) target = $region60
        $region59: #{tpu_custom_call.1} parent=55 // pred_region
          %s406 = sand.u32 %s133, 1
          %s407 = scalar_lea.sflag [#allocation4], %s406
          %s408 = sand.u32 %s133, 1
          %s409 = smul.addr %s408, 16
          %s410 = scalar_lea.vmem [#allocation7], %s409
          %411 = dma.done %s407, 256
        $region60: #{tpu_custom_call.1} parent=55 // pred_fallthru
          _
      $region56: #{tpu_custom_call.1} parent=5 // pred_fallthru
        _
    $region6: #{tpu_custom_call.1} parent=1 // loop_footer
      %s20 = sadd.s32 1, %s16
    $region7: #{tpu_custom_call.1} parent=1 // loop_footer_branch
      %15 = sbr.rel target = $region3
    $region8: #{tpu_custom_call.1} parent=1 // loop_exit
      _
    %412 = vsyncpa [#allocation3], 1
    %s413 = scalar_lea.sflag [#allocation3], 1
    %414 = vsyncpa %s413, 1
    %415 = vsyncpa [#allocation6], 1
    %s416 = scalar_lea.sflag [#allocation6], 1
    %417 = vsyncpa %s416, 1
    %418 = vsyncpa [#allocation4], 1
    %s419 = scalar_lea.sflag [#allocation4], 1
    %420 = vsyncpa %s419, 1

</llo_original>
